<compile_context>
chip_gen: v6e
topology: v6e:2x2x1
jax: 0.10.0
libtpu: 0.0.40
codegen_flags: <defaults>
</compile_context>

<pallas_src>
import functools

import jax
import jax.numpy as jnp
from jax import lax
from jax.experimental import pallas as pl
from jax.experimental.pallas import tpu as pltpu


def rnn_gols_kernel(x_ref, w_hh_t_ref, params_ref, b_out_ref, o_ref, *, T, B):
    # x_ref:      [B, T]  f32 (input_size == 1, squeezed in the wrapper)
    # w_hh_t_ref: [H, H]  (= W_hh^T)
    # params_ref: [3, H]  row 0 = W_ih[:, 0]        (input weight, I == 1)
    #                     row 1 = b_ih + b_hh       (combined RNN bias)
    #                     row 2 = W_out[0, :]       (output-head weight)
    # b_out_ref:  [1, 1]  SMEM scalar (output-head bias)
    # o_ref:      [1, B]  lane-dense output (batch on lanes)
    w_hh_t = w_hh_t_ref[...]                 # load once, stays resident
    w_ih_row = params_ref[0:1, :]            # [1, H]
    bias = params_ref[1:2, :]                # [1, H]
    w_out = params_ref[2:3, :]               # [1, H]

    # Peeled first step: h0 == 0 so the recurrent matmul is dead work.
    # I == 1 -> input projection is a VPU broadcast outer product.
    h = jnp.tanh(x_ref[:, 0:1] * w_ih_row + bias)          # [B, H]

    # Serial recurrence, fully unrolled (T static & tiny).  Only the [B,H]@[H,H]
    # recurrent matmul + tanh sit on the critical path; the input contribution
    # is a VPU broadcast-multiply that overlaps with the MXU.
    for t in range(1, T):
        pre = (x_ref[:, t:t + 1] * w_ih_row + bias
               + jnp.dot(h, w_hh_t, preferred_element_type=jnp.float32))
        h = jnp.tanh(pre)

    # Output head: VPU broadcast-multiply + lane reduction (no N=1 MXU matmul),
    # written lane-dense as [1, B]; scalar bias folded in from SMEM.
    y_row = jnp.sum(h * w_out, axis=-1)[None, :]           # [1, B]
    o_ref[...] = y_row + b_out_ref[0, 0]


def rnn_gols_forward(x, w_ih, w_hh, b_ih, b_hh, w_out, b_out):
    """x: [B, T, 1] (batch_first, like PyTorch). Returns [B, 1]."""
    B, T, I = x.shape
    assert I == 1, "kernel is specialized for input_size == 1"
    H = w_hh.shape[0]

    x2d = x.reshape(B, T).astype(jnp.float32)               # squeeze I == 1
    params = jnp.stack(
        [w_ih.reshape(H).astype(jnp.float32),                # W_ih[:, 0]
         (b_ih + b_hh).astype(jnp.float32),                  # combined bias
         w_out.reshape(H).astype(jnp.float32)],              # output-head row
        axis=0)                                              # [3, H], one DMA
    b_out_s = b_out.reshape(1, 1).astype(jnp.float32)        # SMEM scalar

    vmem = pl.BlockSpec(memory_space=pltpu.MemorySpace.VMEM)
    smem = pl.BlockSpec(memory_space=pltpu.MemorySpace.SMEM)
    kernel = functools.partial(rnn_gols_kernel, T=T, B=B)
    out = pl.pallas_call(
        kernel,
        out_shape=jax.ShapeDtypeStruct((1, B), jnp.float32),
        in_specs=[vmem, vmem, vmem, smem],
        out_specs=vmem,
    )(x2d, w_hh.T.astype(jnp.float32), params, b_out_s)
    # [1, B] lane-dense kernel output -> [B, 1] to match nn.Linear(H, 1).
    return out.reshape(B, 1)


def rnn_gols_reference(x, w_ih, w_hh, b_ih, b_hh, w_out, b_out):
    """Pure-JAX reference matching torch semantics."""
    B, T, I = x.shape
    H = w_hh.shape[0]

    def step(h, x_t):
        h_new = jnp.tanh(x_t @ w_ih.T + b_ih + h @ w_hh.T + b_hh)
        return h_new, None

    h0 = jnp.zeros((B, H), jnp.float32)
    h_last, _ = lax.scan(step, h0, jnp.transpose(x, (1, 0, 2)))
    return h_last @ w_out.T + b_out


if __name__ == "__main__":
    # Module hyperparameters (match the PyTorch module)
    input_size, hidden_size, num_layers = 1, 32, 1
    assert num_layers == 1
    B, T = 2, 8

    key = jax.random.PRNGKey(0)
    k = jax.random.split(key, 8)
    bound = 1.0 / jnp.sqrt(hidden_size)        # PyTorch default uniform init bound

    # nn.RNN parameters (layer 0)
    w_ih = jax.random.uniform(k[0], (hidden_size, input_size), jnp.float32, -bound, bound)
    w_hh = jax.random.uniform(k[1], (hidden_size, hidden_size), jnp.float32, -bound, bound)
    b_ih = jax.random.uniform(k[2], (hidden_size,), jnp.float32, -bound, bound)
    b_hh = jax.random.uniform(k[3], (hidden_size,), jnp.float32, -bound, bound)
    # nn.Linear(hidden_size, 1) parameters
    w_out = jax.random.uniform(k[4], (1, hidden_size), jnp.float32, -bound, bound)
    b_out = jax.random.uniform(k[5], (1,), jnp.float32, -bound, bound)

    # Input: [B, T, input_size], batch_first like PyTorch
    x = jax.random.normal(k[6], (B, T, input_size), jnp.float32)

    y = rnn_gols_forward(x, w_ih, w_hh, b_ih, b_hh, w_out, b_out)
    jax.block_until_ready(y)

    y_ref = rnn_gols_reference(x, w_ih, w_hh, b_ih, b_hh, w_out, b_out)
    assert y.shape == (B, 1)
    assert jnp.allclose(y, y_ref, rtol=1e-4, atol=1e-5), (y, y_ref)

    print("KERNEL_OK")
</pallas_src>

<mosaic_0001>
module attributes {stable_mosaic.version = 11 : i64} {
  func.func @rnn_gols_kernel(%arg0: memref<2x8xf32, #tpu.memory_space<vmem>>, %arg1: memref<32x32xf32, #tpu.memory_space<vmem>>, %arg2: memref<3x32xf32, #tpu.memory_space<vmem>>, %arg3: memref<1x1xf32, #tpu.memory_space<smem>>, %arg4: memref<1x2xf32, #tpu.memory_space<vmem>>) attributes {dimension_semantics = [], scalar_prefetch = 0 : i64, scratch_operands = 0 : i64, tpu.core_type = #tpu.core_type<tc>} {
    %c0 = arith.constant 0 : index
    %c0_0 = arith.constant 0 : index
    %0 = vector.load %arg1[%c0, %c0_0] : memref<32x32xf32, #tpu.memory_space<vmem>>, vector<32x32xf32>
    %c0_1 = arith.constant 0 : index
    %c0_2 = arith.constant 0 : index
    %1 = vector.load %arg2[%c0_1, %c0_2] : memref<3x32xf32, #tpu.memory_space<vmem>>, vector<1x32xf32>
    %c1 = arith.constant 1 : index
    %c0_3 = arith.constant 0 : index
    %2 = vector.load %arg2[%c1, %c0_3] : memref<3x32xf32, #tpu.memory_space<vmem>>, vector<1x32xf32>
    %c2 = arith.constant 2 : index
    %c0_4 = arith.constant 0 : index
    %3 = vector.load %arg2[%c2, %c0_4] : memref<3x32xf32, #tpu.memory_space<vmem>>, vector<1x32xf32>
    %c0_5 = arith.constant 0 : index
    %c0_6 = arith.constant 0 : index
    %4 = vector.load %arg0[%c0_5, %c0_6] : memref<2x8xf32, #tpu.memory_space<vmem>>, vector<2x1xf32>
    %5 = vector.broadcast %4 : vector<2x1xf32> to vector<2x32xf32>
    %6 = vector.broadcast %1 : vector<1x32xf32> to vector<2x32xf32>
    %7 = arith.mulf %5, %6 : vector<2x32xf32>
    %8 = vector.broadcast %2 : vector<1x32xf32> to vector<2x32xf32>
    %9 = arith.addf %7, %8 : vector<2x32xf32>
    %10 = math.tanh %9 : vector<2x32xf32>
    %c0_7 = arith.constant 0 : index
    %c1_8 = arith.constant 1 : index
    %11 = vector.load %arg0[%c0_7, %c1_8] : memref<2x8xf32, #tpu.memory_space<vmem>>, vector<2x1xf32>
    %12 = vector.broadcast %11 : vector<2x1xf32> to vector<2x32xf32>
    %13 = vector.broadcast %1 : vector<1x32xf32> to vector<2x32xf32>
    %14 = arith.mulf %12, %13 : vector<2x32xf32>
    %15 = vector.broadcast %2 : vector<1x32xf32> to vector<2x32xf32>
    %16 = arith.addf %14, %15 : vector<2x32xf32>
    %cst = arith.constant dense<0.000000e+00> : vector<2x32xf32>
    %17 = tpu.matmul %10, %0, %cst {dimension_numbers = #tpu.dot_dimension_numbers<[1], [0], [0], [1], [0, 0, 1, 1], [], []>} : vector<2x32xf32>, vector<32x32xf32>, vector<2x32xf32> -> vector<2x32xf32>
    %18 = arith.addf %16, %17 : vector<2x32xf32>
    %19 = math.tanh %18 : vector<2x32xf32>
    %c0_9 = arith.constant 0 : index
    %c2_10 = arith.constant 2 : index
    %20 = vector.load %arg0[%c0_9, %c2_10] : memref<2x8xf32, #tpu.memory_space<vmem>>, vector<2x1xf32>
    %21 = vector.broadcast %20 : vector<2x1xf32> to vector<2x32xf32>
    %22 = vector.broadcast %1 : vector<1x32xf32> to vector<2x32xf32>
    %23 = arith.mulf %21, %22 : vector<2x32xf32>
    %24 = vector.broadcast %2 : vector<1x32xf32> to vector<2x32xf32>
    %25 = arith.addf %23, %24 : vector<2x32xf32>
    %cst_11 = arith.constant dense<0.000000e+00> : vector<2x32xf32>
    %26 = tpu.matmul %19, %0, %cst_11 {dimension_numbers = #tpu.dot_dimension_numbers<[1], [0], [0], [1], [0, 0, 1, 1], [], []>} : vector<2x32xf32>, vector<32x32xf32>, vector<2x32xf32> -> vector<2x32xf32>
    %27 = arith.addf %25, %26 : vector<2x32xf32>
    %28 = math.tanh %27 : vector<2x32xf32>
    %c0_12 = arith.constant 0 : index
    %c3 = arith.constant 3 : index
    %29 = vector.load %arg0[%c0_12, %c3] : memref<2x8xf32, #tpu.memory_space<vmem>>, vector<2x1xf32>
    %30 = vector.broadcast %29 : vector<2x1xf32> to vector<2x32xf32>
    %31 = vector.broadcast %1 : vector<1x32xf32> to vector<2x32xf32>
    %32 = arith.mulf %30, %31 : vector<2x32xf32>
    %33 = vector.broadcast %2 : vector<1x32xf32> to vector<2x32xf32>
    %34 = arith.addf %32, %33 : vector<2x32xf32>
    %cst_13 = arith.constant dense<0.000000e+00> : vector<2x32xf32>
    %35 = tpu.matmul %28, %0, %cst_13 {dimension_numbers = #tpu.dot_dimension_numbers<[1], [0], [0], [1], [0, 0, 1, 1], [], []>} : vector<2x32xf32>, vector<32x32xf32>, vector<2x32xf32> -> vector<2x32xf32>
    %36 = arith.addf %34, %35 : vector<2x32xf32>
    %37 = math.tanh %36 : vector<2x32xf32>
    %c0_14 = arith.constant 0 : index
    %c4 = arith.constant 4 : index
    %38 = vector.load %arg0[%c0_14, %c4] : memref<2x8xf32, #tpu.memory_space<vmem>>, vector<2x1xf32>
    %39 = vector.broadcast %38 : vector<2x1xf32> to vector<2x32xf32>
    %40 = vector.broadcast %1 : vector<1x32xf32> to vector<2x32xf32>
    %41 = arith.mulf %39, %40 : vector<2x32xf32>
    %42 = vector.broadcast %2 : vector<1x32xf32> to vector<2x32xf32>
    %43 = arith.addf %41, %42 : vector<2x32xf32>
    %cst_15 = arith.constant dense<0.000000e+00> : vector<2x32xf32>
    %44 = tpu.matmul %37, %0, %cst_15 {dimension_numbers = #tpu.dot_dimension_numbers<[1], [0], [0], [1], [0, 0, 1, 1], [], []>} : vector<2x32xf32>, vector<32x32xf32>, vector<2x32xf32> -> vector<2x32xf32>
    %45 = arith.addf %43, %44 : vector<2x32xf32>
    %46 = math.tanh %45 : vector<2x32xf32>
    %c0_16 = arith.constant 0 : index
    %c5 = arith.constant 5 : index
    %47 = vector.load %arg0[%c0_16, %c5] : memref<2x8xf32, #tpu.memory_space<vmem>>, vector<2x1xf32>
    %48 = vector.broadcast %47 : vector<2x1xf32> to vector<2x32xf32>
    %49 = vector.broadcast %1 : vector<1x32xf32> to vector<2x32xf32>
    %50 = arith.mulf %48, %49 : vector<2x32xf32>
    %51 = vector.broadcast %2 : vector<1x32xf32> to vector<2x32xf32>
    %52 = arith.addf %50, %51 : vector<2x32xf32>
    %cst_17 = arith.constant dense<0.000000e+00> : vector<2x32xf32>
    %53 = tpu.matmul %46, %0, %cst_17 {dimension_numbers = #tpu.dot_dimension_numbers<[1], [0], [0], [1], [0, 0, 1, 1], [], []>} : vector<2x32xf32>, vector<32x32xf32>, vector<2x32xf32> -> vector<2x32xf32>
    %54 = arith.addf %52, %53 : vector<2x32xf32>
    %55 = math.tanh %54 : vector<2x32xf32>
    %c0_18 = arith.constant 0 : index
    %c6 = arith.constant 6 : index
    %56 = vector.load %arg0[%c0_18, %c6] : memref<2x8xf32, #tpu.memory_space<vmem>>, vector<2x1xf32>
    %57 = vector.broadcast %56 : vector<2x1xf32> to vector<2x32xf32>
    %58 = vector.broadcast %1 : vector<1x32xf32> to vector<2x32xf32>
    %59 = arith.mulf %57, %58 : vector<2x32xf32>
    %60 = vector.broadcast %2 : vector<1x32xf32> to vector<2x32xf32>
    %61 = arith.addf %59, %60 : vector<2x32xf32>
    %cst_19 = arith.constant dense<0.000000e+00> : vector<2x32xf32>
    %62 = tpu.matmul %55, %0, %cst_19 {dimension_numbers = #tpu.dot_dimension_numbers<[1], [0], [0], [1], [0, 0, 1, 1], [], []>} : vector<2x32xf32>, vector<32x32xf32>, vector<2x32xf32> -> vector<2x32xf32>
    %63 = arith.addf %61, %62 : vector<2x32xf32>
    %64 = math.tanh %63 : vector<2x32xf32>
    %c0_20 = arith.constant 0 : index
    %c7 = arith.constant 7 : index
    %65 = vector.load %arg0[%c0_20, %c7] : memref<2x8xf32, #tpu.memory_space<vmem>>, vector<2x1xf32>
    %66 = vector.broadcast %65 : vector<2x1xf32> to vector<2x32xf32>
    %67 = vector.broadcast %1 : vector<1x32xf32> to vector<2x32xf32>
    %68 = arith.mulf %66, %67 : vector<2x32xf32>
    %69 = vector.broadcast %2 : vector<1x32xf32> to vector<2x32xf32>
    %70 = arith.addf %68, %69 : vector<2x32xf32>
    %cst_21 = arith.constant dense<0.000000e+00> : vector<2x32xf32>
    %71 = tpu.matmul %64, %0, %cst_21 {dimension_numbers = #tpu.dot_dimension_numbers<[1], [0], [0], [1], [0, 0, 1, 1], [], []>} : vector<2x32xf32>, vector<32x32xf32>, vector<2x32xf32> -> vector<2x32xf32>
    %72 = arith.addf %70, %71 : vector<2x32xf32>
    %73 = math.tanh %72 : vector<2x32xf32>
    %74 = vector.broadcast %3 : vector<1x32xf32> to vector<2x32xf32>
    %75 = arith.mulf %73, %74 : vector<2x32xf32>
    %cst_22 = arith.constant dense<0.000000e+00> : vector<2xf32>
    %76 = vector.multi_reduction <add>, %75, %cst_22 [1] : vector<2x32xf32> to vector<2xf32>
    %77 = vector.shape_cast %76 : vector<2xf32> to vector<1x2xf32>
    %c0_23 = arith.constant 0 : index
    %c0_24 = arith.constant 0 : index
    %78 = memref.load %arg3[%c0_23, %c0_24] : memref<1x1xf32, #tpu.memory_space<smem>>
    %79 = vector.broadcast %78 : f32 to vector<1x2xf32>
    %80 = arith.addf %77, %79 : vector<1x2xf32>
    %c0_25 = arith.constant 0 : index
    %c0_26 = arith.constant 0 : index
    %81 = vector.load %arg4[%c0_25, %c0_26] : memref<1x2xf32, #tpu.memory_space<vmem>>, vector<1x2xf32>
    tpu.vector_store %arg4[%c0_25, %c0_26], %80 {strides = array<i32>} : memref<1x2xf32, #tpu.memory_space<vmem>>, vector<1x2xf32>,
    return
  }
}

</mosaic_0001>

<llo_original>
// kernel: tpu_custom_call.1
$region0: #{tpu_custom_call.1}
  #allocation0 [shape = 'u32[]', space=smem, size = 0x4, offset = 0x4, fixed_abs, tag = 'smem constant byte address 0x4 - core index']
  #allocation1 [shape = 'u32[144,128]{1,0:T(1,128)}', space=vmem, size = 0x12000, scoped, tag = 'internal scratch']
  #allocation2 [shape = 'f32[1,1]{1,0:T(1,128)S(6)}', space=smem, size = 0x200, scoped, tag = 'scoped memory for tpu_custom_call.1']
  %s0 = inlined_call_operand.hbm [shape: f32[2,8], index: 0, kind: input, shape index: {}]
  %s1 = inlined_call_operand.hbm [shape: f32[32,32], index: 1, kind: input, shape index: {}]
  %s2 = inlined_call_operand.vmem [shape: f32[3,32], index: 2, kind: input, shape index: {}]
  %s3 = inlined_call_operand.<no memory space> [shape: f32[1,1], index: 3, kind: input, shape index: {}]
  %s4 = inlined_call_operand.hbm [shape: f32[1,2], index: 4, kind: output, shape index: {}]
  %s5 = sld [smem:[#allocation0]]
  $region34: #{tpu_custom_call.1} parent=0
    _
  %s7 = ssub.s32 1, %s5
  %s8 = scalar_select 0, %s7, %s5
  %9 = sst [smem:[#allocation2]] %s3
  $region1: #{tpu_custom_call.1} parent=0
    #allocation3 [shape = 'u8[1024]{0}', space=vmem, size = 0x400, scoped, tag = 'input window, operand 0, single buffered']
    #allocation4 [shape = 's32[1]{0}', space=sflag, size = 0x4, scoped, tag = 'scoped memory for tpu_custom_call.1']
    #allocation5 [shape = 's32[1]{0}', space=sflag, size = 0x4, scoped, tag = 'scoped memory for tpu_custom_call.1']
    #allocation6 [shape = 'u8[16384]{0}', space=vmem, size = 0x4000, scoped, tag = 'input window, operand 1, single buffered']
    #allocation7 [shape = 's32[1]{0}', space=sflag, size = 0x4, scoped, tag = 'scoped memory for tpu_custom_call.1']
    #allocation8 [shape = 'u8[512]{0}', space=vmem, size = 0x400, scoped, tag = 'output window, operand 0, single buffered']
    %10 = vsyncpa [#allocation4], 0
    %11 = vsyncpa [#allocation7], 0
    %12 = vsyncpa [#allocation5], 0
    // Predicated region
    $region2: #{tpu_custom_call.1} parent=1 // pred_check
      _
    $region3: #{tpu_custom_call.1} parent=1 // pred_check_branch
      %14 = sbr.rel (0) target = $region5
    $region4: #{tpu_custom_call.1} parent=1 // pred_region
      %s16 = ssub.s32 32, 32
      %17 = vsyncadd [#allocation4], %s16
      %s19 = sshll.u32 [#allocation3], 4
      %s20 = int_to_ptr.vmem [resolvable:$true] %s19
      %22 = dma.hbm_to_vmem [thread:$0]  %s0, 32, %s20, [#allocation4]
    $region5: #{tpu_custom_call.1} parent=1 // pred_fallthru
      _
    // Predicated region
    $region6: #{tpu_custom_call.1} parent=1 // pred_check
      _
    $region7: #{tpu_custom_call.1} parent=1 // pred_check_branch
      %24 = sbr.rel (0) target = $region9
    $region8: #{tpu_custom_call.1} parent=1 // pred_region
      %s26 = ssub.s32 512, 512
      %27 = vsyncadd [#allocation7], %s26
      %s28 = sshll.u32 [#allocation6], 4
      %s29 = int_to_ptr.vmem [resolvable:$true] %s28
      %34 = dma.hbm_to_vmem [thread:$0]  %s1, 512, %s29, [#allocation7], 128, 128, 8
    $region9: #{tpu_custom_call.1} parent=1 // pred_fallthru
      _
    // Predicated region
    $region10: #{tpu_custom_call.1} parent=1 // pred_check
      _
    $region11: #{tpu_custom_call.1} parent=1 // pred_check_branch
      %36 = sbr.rel (0) target = $region13
    $region12: #{tpu_custom_call.1} parent=1 // pred_region
      _
    $region13: #{tpu_custom_call.1} parent=1 // pred_fallthru
      _
    // Predicated region
    $region14: #{tpu_custom_call.1} parent=1 // pred_check
      _
    $region15: #{tpu_custom_call.1} parent=1 // pred_check_branch
      %38 = sbr.rel (0) target = $region17
    $region16: #{tpu_custom_call.1} parent=1 // pred_region
      _
    $region17: #{tpu_custom_call.1} parent=1 // pred_fallthru
      _
    // Predicated region
    $region18: #{tpu_custom_call.1} parent=1 // pred_check
      _
    $region19: #{tpu_custom_call.1} parent=1 // pred_check_branch
      %40 = sbr.rel (0) target = $region21
    $region20: #{tpu_custom_call.1} parent=1 // pred_region
      %41 = dma.done [#allocation4], 32
    $region21: #{tpu_custom_call.1} parent=1 // pred_fallthru
      _
    // Predicated region
    $region22: #{tpu_custom_call.1} parent=1 // pred_check
      _
    $region23: #{tpu_custom_call.1} parent=1 // pred_check_branch
      %43 = sbr.rel (0) target = $region25
    $region24: #{tpu_custom_call.1} parent=1 // pred_region
      %44 = dma.done [#allocation7], 512
    $region25: #{tpu_custom_call.1} parent=1 // pred_fallthru
      _
    %v45 = vld [vmem:[#allocation6] sm:$0xff]
    %v46 = vld [vmem:[#allocation6 + $0x8] sm:$0xff]
    %v47 = vld [vmem:[#allocation6 + $0x10] sm:$0xff]
    %v48 = vld [vmem:[#allocation6 + $0x18] sm:$0xff]
    %v49 = vld [vmem:[%s2] sm:$0x1]
    %v50 = vld [vmem:[%s2 + $0x1] sm:$0x1]
    %v51 = vld [vmem:[%s2 + $0x2] sm:$0x1]
    %v52 = vld [vmem:[#allocation3] sm:$0x3]
    %54 = vset.pattern.permute.xlu0 0
    %55 = vperm.xlu0 %54, %v52
    %v56 = vpop.permute.xlu0 %55
    %v58 = vlaneseq
    %v59 = vshrl.u32 %v58, 7
    %v60 = vsub.s32 0, %v59
    %v61 = vrot.slane %v49, %v60
    %v62 = vmul.f32 %v56, %v61
    %v63 = vlaneseq
    %v64 = vshrl.u32 %v63, 7
    %v65 = vsub.s32 0, %v64
    %v66 = vrot.slane %v50, %v65
    %v67 = vadd.f32 %v62, %v66
    %v68 = vtanh.pop %v67
    %69 = vset.pattern.permute.xlu0 1
    %70 = vperm.xlu0 %69, %v52
    %v71 = vpop.permute.xlu0 %70
    %v73 = vmul.f32 %v71, %v61
    %v74 = vadd.f32 %v73, %v66
    %vm75 = vcmask 261120
    %v77 = vsel %vm75, %v68, 0
    %79 = vmatprep.subr.mxu0 0.0
    %80 = vmatpush1.msra.mxu0 0.0
    %81 = vmatprep.subr.mxu0 0.0
    %82 = vmatpush1.msra.mxu0 0.0
    %83 = vmatprep.subr.mxu0 0.0
    %84 = vmatpush1.msra.mxu0 0.0
    %85 = vmatprep.subr.mxu0 0.0
    %86 = vmatpush1.msra.mxu0 0.0
    %87 = vmatprep.subr.mxu0 0.0
    %88 = vmatpush1.msra.mxu0 0.0
    %89 = vmatprep.subr.mxu0 0.0
    %90 = vmatpush1.msra.mxu0 0.0
    %91 = vmatprep.subr.mxu0 0.0
    %92 = vmatpush1.msra.mxu0 0.0
    %93 = vmatprep.subr.mxu0 0.0
    %94 = vmatpush1.msra.mxu0 0.0
    %95 = vmatprep.subr.mxu0 0.0
    %96 = vmatpush1.msra.mxu0 0.0
    %97 = vmatprep.subr.mxu0 0.0
    %98 = vmatpush1.msra.mxu0 0.0
    %99 = vmatprep.subr.mxu0 0.0
    %100 = vmatpush1.msra.mxu0 0.0
    %101 = vmatprep.subr.mxu0 0.0
    %102 = vmatpush1.msra.mxu0 0.0
    %103 = vmatprep.subr.mxu0 0.0
    %104 = vmatpush1.msra.mxu0 %v48
    %105 = vmatprep.subr.mxu0 0.0
    %106 = vmatpush1.msra.mxu0 %v47
    %107 = vmatprep.subr.mxu0 0.0
    %108 = vmatpush1.msra.mxu0 %v46
    %109 = vmatprep.subr.mxu0 0.0
    %110 = vmatpush1.msra.mxu0 %v45
    %111 = vmatprep.subr.mxu0 0.0
    %112 = vmatpush2.msra.mxu0 0.0
    %113 = vmatprep.subr.mxu0 0.0
    %114 = vmatpush2.msra.mxu0 0.0
    %115 = vmatprep.subr.mxu0 0.0
    %116 = vmatpush2.msra.mxu0 0.0
    %117 = vmatprep.subr.mxu0 0.0
    %118 = vmatpush2.msra.mxu0 0.0
    %119 = vmatprep.subr.mxu0 0.0
    %120 = vmatpush2.msra.mxu0 0.0
    %121 = vmatprep.subr.mxu0 0.0
    %122 = vmatpush2.msra.mxu0 0.0
    %123 = vmatprep.subr.mxu0 0.0
    %124 = vmatpush2.msra.mxu0 0.0
    %125 = vmatprep.subr.mxu0 0.0
    %126 = vmatpush2.msra.mxu0 0.0
    %127 = vmatprep.subr.mxu0 0.0
    %128 = vmatpush2.msra.mxu0 0.0
    %129 = vmatprep.subr.mxu0 0.0
    %130 = vmatpush2.msra.mxu0 0.0
    %131 = vmatprep.subr.mxu0 0.0
    %132 = vmatpush2.msra.mxu0 0.0
    %133 = vmatprep.subr.mxu0 0.0
    %134 = vmatpush2.msra.mxu0 0.0
    %135 = vmatprep.subr.mxu0 0.0
    %136 = vmatpush2.msra.mxu0 0.0
    %137 = vmatprep.subr.mxu0 0.0
    %138 = vmatpush2.msra.mxu0 0.0
    %139 = vmatprep.subr.mxu0 0.0
    %140 = vmatpush2.msra.mxu0 0.0
    %141 = vmatprep.subr.mxu0 0.0
    %142 = vmatpush2.msra.mxu0 0.0
    %143 = vmatprep.mubr.f32.mxu0 0.0
    %144 = vmatmul.mubr.f32.gmra.mxu0 %v77
    %v145 = vpop.f32.mrf.mxu0
    %v146 = vadd.f32 0.0, %v145
    %v147 = vpop.f32.mrf.mxu0
    %148 = vdwg.mxu0
    %v149 = vadd.f32 %v74, %v146
    %v150 = vtanh.pop %v149
    %151 = vset.pattern.permute.xlu0 2
    %152 = vperm.xlu0 %151, %v52
    %v153 = vpop.permute.xlu0 %152
    %v155 = vmul.f32 %v153, %v61
    %v156 = vadd.f32 %v155, %v66
    %v158 = vsel %vm75, %v150, 0
    %160 = vmatprep.subr.mxu0 0.0
    %161 = vmatpush1.msra.mxu0 0.0
    %162 = vmatprep.subr.mxu0 0.0
    %163 = vmatpush1.msra.mxu0 0.0
    %164 = vmatprep.subr.mxu0 0.0
    %165 = vmatpush1.msra.mxu0 0.0
    %166 = vmatprep.subr.mxu0 0.0
    %167 = vmatpush1.msra.mxu0 0.0
    %168 = vmatprep.subr.mxu0 0.0
    %169 = vmatpush1.msra.mxu0 0.0
    %170 = vmatprep.subr.mxu0 0.0
    %171 = vmatpush1.msra.mxu0 0.0
    %172 = vmatprep.subr.mxu0 0.0
    %173 = vmatpush1.msra.mxu0 0.0
    %174 = vmatprep.subr.mxu0 0.0
    %175 = vmatpush1.msra.mxu0 0.0
    %176 = vmatprep.subr.mxu0 0.0
    %177 = vmatpush1.msra.mxu0 0.0
    %178 = vmatprep.subr.mxu0 0.0
    %179 = vmatpush1.msra.mxu0 0.0
    %180 = vmatprep.subr.mxu0 0.0
    %181 = vmatpush1.msra.mxu0 0.0
    %182 = vmatprep.subr.mxu0 0.0
    %183 = vmatpush1.msra.mxu0 0.0
    %184 = vmatprep.subr.mxu0 0.0
    %185 = vmatpush1.msra.mxu0 %v48
    %186 = vmatprep.subr.mxu0 0.0
    %187 = vmatpush1.msra.mxu0 %v47
    %188 = vmatprep.subr.mxu0 0.0
    %189 = vmatpush1.msra.mxu0 %v46
    %190 = vmatprep.subr.mxu0 0.0
    %191 = vmatpush1.msra.mxu0 %v45
    %192 = vmatprep.subr.mxu0 0.0
    %193 = vmatpush2.msra.mxu0 0.0
    %194 = vmatprep.subr.mxu0 0.0
    %195 = vmatpush2.msra.mxu0 0.0
    %196 = vmatprep.subr.mxu0 0.0
    %197 = vmatpush2.msra.mxu0 0.0
    %198 = vmatprep.subr.mxu0 0.0
    %199 = vmatpush2.msra.mxu0 0.0
    %200 = vmatprep.subr.mxu0 0.0
    %201 = vmatpush2.msra.mxu0 0.0
    %202 = vmatprep.subr.mxu0 0.0
    %203 = vmatpush2.msra.mxu0 0.0
    %204 = vmatprep.subr.mxu0 0.0
    %205 = vmatpush2.msra.mxu0 0.0
    %206 = vmatprep.subr.mxu0 0.0
    %207 = vmatpush2.msra.mxu0 0.0
    %208 = vmatprep.subr.mxu0 0.0
    %209 = vmatpush2.msra.mxu0 0.0
    %210 = vmatprep.subr.mxu0 0.0
    %211 = vmatpush2.msra.mxu0 0.0
    %212 = vmatprep.subr.mxu0 0.0
    %213 = vmatpush2.msra.mxu0 0.0
    %214 = vmatprep.subr.mxu0 0.0
    %215 = vmatpush2.msra.mxu0 0.0
    %216 = vmatprep.subr.mxu0 0.0
    %217 = vmatpush2.msra.mxu0 0.0
    %218 = vmatprep.subr.mxu0 0.0
    %219 = vmatpush2.msra.mxu0 0.0
    %220 = vmatprep.subr.mxu0 0.0
    %221 = vmatpush2.msra.mxu0 0.0
    %222 = vmatprep.subr.mxu0 0.0
    %223 = vmatpush2.msra.mxu0 0.0
    %224 = vmatprep.mubr.f32.mxu0 0.0
    %225 = vmatmul.mubr.f32.gmra.mxu0 %v158
    %v226 = vpop.f32.mrf.mxu0
    %v227 = vadd.f32 0.0, %v226
    %v228 = vpop.f32.mrf.mxu0
    %229 = vdwg.mxu0
    %v230 = vadd.f32 %v156, %v227
    %v231 = vtanh.pop %v230
    %232 = vset.pattern.permute.xlu0 3
    %233 = vperm.xlu0 %232, %v52
    %v234 = vpop.permute.xlu0 %233
    %v236 = vmul.f32 %v234, %v61
    %v237 = vadd.f32 %v236, %v66
    %v239 = vsel %vm75, %v231, 0
    %241 = vmatprep.subr.mxu0 0.0
    %242 = vmatpush1.msra.mxu0 0.0
    %243 = vmatprep.subr.mxu0 0.0
    %244 = vmatpush1.msra.mxu0 0.0
    %245 = vmatprep.subr.mxu0 0.0
    %246 = vmatpush1.msra.mxu0 0.0
    %247 = vmatprep.subr.mxu0 0.0
    %248 = vmatpush1.msra.mxu0 0.0
    %249 = vmatprep.subr.mxu0 0.0
    %250 = vmatpush1.msra.mxu0 0.0
    %251 = vmatprep.subr.mxu0 0.0
    %252 = vmatpush1.msra.mxu0 0.0
    %253 = vmatprep.subr.mxu0 0.0
    %254 = vmatpush1.msra.mxu0 0.0
    %255 = vmatprep.subr.mxu0 0.0
    %256 = vmatpush1.msra.mxu0 0.0
    %257 = vmatprep.subr.mxu0 0.0
    %258 = vmatpush1.msra.mxu0 0.0
    %259 = vmatprep.subr.mxu0 0.0
    %260 = vmatpush1.msra.mxu0 0.0
    %261 = vmatprep.subr.mxu0 0.0
    %262 = vmatpush1.msra.mxu0 0.0
    %263 = vmatprep.subr.mxu0 0.0
    %264 = vmatpush1.msra.mxu0 0.0
    %265 = vmatprep.subr.mxu0 0.0
    %266 = vmatpush1.msra.mxu0 %v48
    %267 = vmatprep.subr.mxu0 0.0
    %268 = vmatpush1.msra.mxu0 %v47
    %269 = vmatprep.subr.mxu0 0.0
    %270 = vmatpush1.msra.mxu0 %v46
    %271 = vmatprep.subr.mxu0 0.0
    %272 = vmatpush1.msra.mxu0 %v45
    %273 = vmatprep.subr.mxu0 0.0
    %274 = vmatpush2.msra.mxu0 0.0
    %275 = vmatprep.subr.mxu0 0.0
    %276 = vmatpush2.msra.mxu0 0.0
    %277 = vmatprep.subr.mxu0 0.0
    %278 = vmatpush2.msra.mxu0 0.0
    %279 = vmatprep.subr.mxu0 0.0
    %280 = vmatpush2.msra.mxu0 0.0
    %281 = vmatprep.subr.mxu0 0.0
    %282 = vmatpush2.msra.mxu0 0.0
    %283 = vmatprep.subr.mxu0 0.0
    %284 = vmatpush2.msra.mxu0 0.0
    %285 = vmatprep.subr.mxu0 0.0
    %286 = vmatpush2.msra.mxu0 0.0
    %287 = vmatprep.subr.mxu0 0.0
    %288 = vmatpush2.msra.mxu0 0.0
    %289 = vmatprep.subr.mxu0 0.0
    %290 = vmatpush2.msra.mxu0 0.0
    %291 = vmatprep.subr.mxu0 0.0
    %292 = vmatpush2.msra.mxu0 0.0
    %293 = vmatprep.subr.mxu0 0.0
    %294 = vmatpush2.msra.mxu0 0.0
    %295 = vmatprep.subr.mxu0 0.0
    %296 = vmatpush2.msra.mxu0 0.0
    %297 = vmatprep.subr.mxu0 0.0
    %298 = vmatpush2.msra.mxu0 0.0
    %299 = vmatprep.subr.mxu0 0.0
    %300 = vmatpush2.msra.mxu0 0.0
    %301 = vmatprep.subr.mxu0 0.0
    %302 = vmatpush2.msra.mxu0 0.0
    %303 = vmatprep.subr.mxu0 0.0
    %304 = vmatpush2.msra.mxu0 0.0
    %305 = vmatprep.mubr.f32.mxu0 0.0
    %306 = vmatmul.mubr.f32.gmra.mxu0 %v239
    %v307 = vpop.f32.mrf.mxu0
    %v308 = vadd.f32 0.0, %v307
    %v309 = vpop.f32.mrf.mxu0
    %310 = vdwg.mxu0
    %v311 = vadd.f32 %v237, %v308
    %v312 = vtanh.pop %v311
    %313 = vset.pattern.permute.xlu0 4
    %314 = vperm.xlu0 %313, %v52
    %v315 = vpop.permute.xlu0 %314
    %v317 = vmul.f32 %v315, %v61
    %v318 = vadd.f32 %v317, %v66
    %v320 = vsel %vm75, %v312, 0
    %322 = vmatprep.subr.mxu0 0.0
    %323 = vmatpush1.msra.mxu0 0.0
    %324 = vmatprep.subr.mxu0 0.0
    %325 = vmatpush1.msra.mxu0 0.0
    %326 = vmatprep.subr.mxu0 0.0
    %327 = vmatpush1.msra.mxu0 0.0
    %328 = vmatprep.subr.mxu0 0.0
    %329 = vmatpush1.msra.mxu0 0.0
    %330 = vmatprep.subr.mxu0 0.0
    %331 = vmatpush1.msra.mxu0 0.0
    %332 = vmatprep.subr.mxu0 0.0
    %333 = vmatpush1.msra.mxu0 0.0
    %334 = vmatprep.subr.mxu0 0.0
    %335 = vmatpush1.msra.mxu0 0.0
    %336 = vmatprep.subr.mxu0 0.0
    %337 = vmatpush1.msra.mxu0 0.0
    %338 = vmatprep.subr.mxu0 0.0
    %339 = vmatpush1.msra.mxu0 0.0
    %340 = vmatprep.subr.mxu0 0.0
    %341 = vmatpush1.msra.mxu0 0.0
    %342 = vmatprep.subr.mxu0 0.0
    %343 = vmatpush1.msra.mxu0 0.0
    %344 = vmatprep.subr.mxu0 0.0
    %345 = vmatpush1.msra.mxu0 0.0
    %346 = vmatprep.subr.mxu0 0.0
    %347 = vmatpush1.msra.mxu0 %v48
    %348 = vmatprep.subr.mxu0 0.0
    %349 = vmatpush1.msra.mxu0 %v47
    %350 = vmatprep.subr.mxu0 0.0
    %351 = vmatpush1.msra.mxu0 %v46
    %352 = vmatprep.subr.mxu0 0.0
    %353 = vmatpush1.msra.mxu0 %v45
    %354 = vmatprep.subr.mxu0 0.0
    %355 = vmatpush2.msra.mxu0 0.0
    %356 = vmatprep.subr.mxu0 0.0
    %357 = vmatpush2.msra.mxu0 0.0
    %358 = vmatprep.subr.mxu0 0.0
    %359 = vmatpush2.msra.mxu0 0.0
    %360 = vmatprep.subr.mxu0 0.0
    %361 = vmatpush2.msra.mxu0 0.0
    %362 = vmatprep.subr.mxu0 0.0
    %363 = vmatpush2.msra.mxu0 0.0
    %364 = vmatprep.subr.mxu0 0.0
    %365 = vmatpush2.msra.mxu0 0.0
    %366 = vmatprep.subr.mxu0 0.0
    %367 = vmatpush2.msra.mxu0 0.0
    %368 = vmatprep.subr.mxu0 0.0
    %369 = vmatpush2.msra.mxu0 0.0
    %370 = vmatprep.subr.mxu0 0.0
    %371 = vmatpush2.msra.mxu0 0.0
    %372 = vmatprep.subr.mxu0 0.0
    %373 = vmatpush2.msra.mxu0 0.0
    %374 = vmatprep.subr.mxu0 0.0
    %375 = vmatpush2.msra.mxu0 0.0
    %376 = vmatprep.subr.mxu0 0.0
    %377 = vmatpush2.msra.mxu0 0.0
    %378 = vmatprep.subr.mxu0 0.0
    %379 = vmatpush2.msra.mxu0 0.0
    %380 = vmatprep.subr.mxu0 0.0
    %381 = vmatpush2.msra.mxu0 0.0
    %382 = vmatprep.subr.mxu0 0.0
    %383 = vmatpush2.msra.mxu0 0.0
    %384 = vmatprep.subr.mxu0 0.0
    %385 = vmatpush2.msra.mxu0 0.0
    %386 = vmatprep.mubr.f32.mxu0 0.0
    %387 = vmatmul.mubr.f32.gmra.mxu0 %v320
    %v388 = vpop.f32.mrf.mxu0
    %v389 = vadd.f32 0.0, %v388
    %v390 = vpop.f32.mrf.mxu0
    %391 = vdwg.mxu0
    %v392 = vadd.f32 %v318, %v389
    %v393 = vtanh.pop %v392
    %394 = vset.pattern.permute.xlu0 5
    %395 = vperm.xlu0 %394, %v52
    %v396 = vpop.permute.xlu0 %395
    %v398 = vmul.f32 %v396, %v61
    %v399 = vadd.f32 %v398, %v66
    %v401 = vsel %vm75, %v393, 0
    %403 = vmatprep.subr.mxu0 0.0
    %404 = vmatpush1.msra.mxu0 0.0
    %405 = vmatprep.subr.mxu0 0.0
    %406 = vmatpush1.msra.mxu0 0.0
    %407 = vmatprep.subr.mxu0 0.0
    %408 = vmatpush1.msra.mxu0 0.0
    %409 = vmatprep.subr.mxu0 0.0
    %410 = vmatpush1.msra.mxu0 0.0
    %411 = vmatprep.subr.mxu0 0.0
    %412 = vmatpush1.msra.mxu0 0.0
    %413 = vmatprep.subr.mxu0 0.0
    %414 = vmatpush1.msra.mxu0 0.0
    %415 = vmatprep.subr.mxu0 0.0
    %416 = vmatpush1.msra.mxu0 0.0
    %417 = vmatprep.subr.mxu0 0.0
    %418 = vmatpush1.msra.mxu0 0.0
    %419 = vmatprep.subr.mxu0 0.0
    %420 = vmatpush1.msra.mxu0 0.0
    %421 = vmatprep.subr.mxu0 0.0
    %422 = vmatpush1.msra.mxu0 0.0
    %423 = vmatprep.subr.mxu0 0.0
    %424 = vmatpush1.msra.mxu0 0.0
    %425 = vmatprep.subr.mxu0 0.0
    %426 = vmatpush1.msra.mxu0 0.0
    %427 = vmatprep.subr.mxu0 0.0
    %428 = vmatpush1.msra.mxu0 %v48
    %429 = vmatprep.subr.mxu0 0.0
    %430 = vmatpush1.msra.mxu0 %v47
    %431 = vmatprep.subr.mxu0 0.0
    %432 = vmatpush1.msra.mxu0 %v46
    %433 = vmatprep.subr.mxu0 0.0
    %434 = vmatpush1.msra.mxu0 %v45
    %435 = vmatprep.subr.mxu0 0.0
    %436 = vmatpush2.msra.mxu0 0.0
    %437 = vmatprep.subr.mxu0 0.0
    %438 = vmatpush2.msra.mxu0 0.0
    %439 = vmatprep.subr.mxu0 0.0
    %440 = vmatpush2.msra.mxu0 0.0
    %441 = vmatprep.subr.mxu0 0.0
    %442 = vmatpush2.msra.mxu0 0.0
    %443 = vmatprep.subr.mxu0 0.0
    %444 = vmatpush2.msra.mxu0 0.0
    %445 = vmatprep.subr.mxu0 0.0
    %446 = vmatpush2.msra.mxu0 0.0
    %447 = vmatprep.subr.mxu0 0.0
    %448 = vmatpush2.msra.mxu0 0.0
    %449 = vmatprep.subr.mxu0 0.0
    %450 = vmatpush2.msra.mxu0 0.0
    %451 = vmatprep.subr.mxu0 0.0
    %452 = vmatpush2.msra.mxu0 0.0
    %453 = vmatprep.subr.mxu0 0.0
    %454 = vmatpush2.msra.mxu0 0.0
    %455 = vmatprep.subr.mxu0 0.0
    %456 = vmatpush2.msra.mxu0 0.0
    %457 = vmatprep.subr.mxu0 0.0
    %458 = vmatpush2.msra.mxu0 0.0
    %459 = vmatprep.subr.mxu0 0.0
    %460 = vmatpush2.msra.mxu0 0.0
    %461 = vmatprep.subr.mxu0 0.0
    %462 = vmatpush2.msra.mxu0 0.0
    %463 = vmatprep.subr.mxu0 0.0
    %464 = vmatpush2.msra.mxu0 0.0
    %465 = vmatprep.subr.mxu0 0.0
    %466 = vmatpush2.msra.mxu0 0.0
    %467 = vmatprep.mubr.f32.mxu0 0.0
    %468 = vmatmul.mubr.f32.gmra.mxu0 %v401
    %v469 = vpop.f32.mrf.mxu0
    %v470 = vadd.f32 0.0, %v469
    %v471 = vpop.f32.mrf.mxu0
    %472 = vdwg.mxu0
    %v473 = vadd.f32 %v399, %v470
    %v474 = vtanh.pop %v473
    %475 = vset.pattern.permute.xlu0 6
    %476 = vperm.xlu0 %475, %v52
    %v477 = vpop.permute.xlu0 %476
    %v479 = vmul.f32 %v477, %v61
    %v480 = vadd.f32 %v479, %v66
    %v482 = vsel %vm75, %v474, 0
    %484 = vmatprep.subr.mxu0 0.0
    %485 = vmatpush1.msra.mxu0 0.0
    %486 = vmatprep.subr.mxu0 0.0
    %487 = vmatpush1.msra.mxu0 0.0
    %488 = vmatprep.subr.mxu0 0.0
    %489 = vmatpush1.msra.mxu0 0.0
    %490 = vmatprep.subr.mxu0 0.0
    %491 = vmatpush1.msra.mxu0 0.0
    %492 = vmatprep.subr.mxu0 0.0
    %493 = vmatpush1.msra.mxu0 0.0
    %494 = vmatprep.subr.mxu0 0.0
    %495 = vmatpush1.msra.mxu0 0.0
    %496 = vmatprep.subr.mxu0 0.0
    %497 = vmatpush1.msra.mxu0 0.0
    %498 = vmatprep.subr.mxu0 0.0
    %499 = vmatpush1.msra.mxu0 0.0
    %500 = vmatprep.subr.mxu0 0.0
    %501 = vmatpush1.msra.mxu0 0.0
    %502 = vmatprep.subr.mxu0 0.0
    %503 = vmatpush1.msra.mxu0 0.0
    %504 = vmatprep.subr.mxu0 0.0
    %505 = vmatpush1.msra.mxu0 0.0
    %506 = vmatprep.subr.mxu0 0.0
    %507 = vmatpush1.msra.mxu0 0.0
    %508 = vmatprep.subr.mxu0 0.0
    %509 = vmatpush1.msra.mxu0 %v48
    %510 = vmatprep.subr.mxu0 0.0
    %511 = vmatpush1.msra.mxu0 %v47
    %512 = vmatprep.subr.mxu0 0.0
    %513 = vmatpush1.msra.mxu0 %v46
    %514 = vmatprep.subr.mxu0 0.0
    %515 = vmatpush1.msra.mxu0 %v45
    %516 = vmatprep.subr.mxu0 0.0
    %517 = vmatpush2.msra.mxu0 0.0
    %518 = vmatprep.subr.mxu0 0.0
    %519 = vmatpush2.msra.mxu0 0.0
    %520 = vmatprep.subr.mxu0 0.0
    %521 = vmatpush2.msra.mxu0 0.0
    %522 = vmatprep.subr.mxu0 0.0
    %523 = vmatpush2.msra.mxu0 0.0
    %524 = vmatprep.subr.mxu0 0.0
    %525 = vmatpush2.msra.mxu0 0.0
    %526 = vmatprep.subr.mxu0 0.0
    %527 = vmatpush2.msra.mxu0 0.0
    %528 = vmatprep.subr.mxu0 0.0
    %529 = vmatpush2.msra.mxu0 0.0
    %530 = vmatprep.subr.mxu0 0.0
    %531 = vmatpush2.msra.mxu0 0.0
    %532 = vmatprep.subr.mxu0 0.0
    %533 = vmatpush2.msra.mxu0 0.0
    %534 = vmatprep.subr.mxu0 0.0
    %535 = vmatpush2.msra.mxu0 0.0
    %536 = vmatprep.subr.mxu0 0.0
    %537 = vmatpush2.msra.mxu0 0.0
    %538 = vmatprep.subr.mxu0 0.0
    %539 = vmatpush2.msra.mxu0 0.0
    %540 = vmatprep.subr.mxu0 0.0
    %541 = vmatpush2.msra.mxu0 0.0
    %542 = vmatprep.subr.mxu0 0.0
    %543 = vmatpush2.msra.mxu0 0.0
    %544 = vmatprep.subr.mxu0 0.0
    %545 = vmatpush2.msra.mxu0 0.0
    %546 = vmatprep.subr.mxu0 0.0
    %547 = vmatpush2.msra.mxu0 0.0
    %548 = vmatprep.mubr.f32.mxu0 0.0
    %549 = vmatmul.mubr.f32.gmra.mxu0 %v482
    %v550 = vpop.f32.mrf.mxu0
    %v551 = vadd.f32 0.0, %v550
    %v552 = vpop.f32.mrf.mxu0
    %553 = vdwg.mxu0
    %v554 = vadd.f32 %v480, %v551
    %v555 = vtanh.pop %v554
    %556 = vset.pattern.permute.xlu0 7
    %557 = vperm.xlu0 %556, %v52
    %v558 = vpop.permute.xlu0 %557
    %v560 = vmul.f32 %v558, %v61
    %v561 = vadd.f32 %v560, %v66
    %v563 = vsel %vm75, %v555, 0
    %565 = vmatprep.subr.mxu0 0.0
    %566 = vmatpush1.msra.mxu0 0.0
    %567 = vmatprep.subr.mxu0 0.0
    %568 = vmatpush1.msra.mxu0 0.0
    %569 = vmatprep.subr.mxu0 0.0
    %570 = vmatpush1.msra.mxu0 0.0
    %571 = vmatprep.subr.mxu0 0.0
    %572 = vmatpush1.msra.mxu0 0.0
    %573 = vmatprep.subr.mxu0 0.0
    %574 = vmatpush1.msra.mxu0 0.0
    %575 = vmatprep.subr.mxu0 0.0
    %576 = vmatpush1.msra.mxu0 0.0
    %577 = vmatprep.subr.mxu0 0.0
    %578 = vmatpush1.msra.mxu0 0.0
    %579 = vmatprep.subr.mxu0 0.0
    %580 = vmatpush1.msra.mxu0 0.0
    %581 = vmatprep.subr.mxu0 0.0
    %582 = vmatpush1.msra.mxu0 0.0
    %583 = vmatprep.subr.mxu0 0.0
    %584 = vmatpush1.msra.mxu0 0.0
    %585 = vmatprep.subr.mxu0 0.0
    %586 = vmatpush1.msra.mxu0 0.0
    %587 = vmatprep.subr.mxu0 0.0
    %588 = vmatpush1.msra.mxu0 0.0
    %589 = vmatprep.subr.mxu0 0.0
    %590 = vmatpush1.msra.mxu0 %v48
    %591 = vmatprep.subr.mxu0 0.0
    %592 = vmatpush1.msra.mxu0 %v47
    %593 = vmatprep.subr.mxu0 0.0
    %594 = vmatpush1.msra.mxu0 %v46
    %595 = vmatprep.subr.mxu0 0.0
    %596 = vmatpush1.msra.mxu0 %v45
    %597 = vmatprep.subr.mxu0 0.0
    %598 = vmatpush2.msra.mxu0 0.0
    %599 = vmatprep.subr.mxu0 0.0
    %600 = vmatpush2.msra.mxu0 0.0
    %601 = vmatprep.subr.mxu0 0.0
    %602 = vmatpush2.msra.mxu0 0.0
    %603 = vmatprep.subr.mxu0 0.0
    %604 = vmatpush2.msra.mxu0 0.0
    %605 = vmatprep.subr.mxu0 0.0
    %606 = vmatpush2.msra.mxu0 0.0
    %607 = vmatprep.subr.mxu0 0.0
    %608 = vmatpush2.msra.mxu0 0.0
    %609 = vmatprep.subr.mxu0 0.0
    %610 = vmatpush2.msra.mxu0 0.0
    %611 = vmatprep.subr.mxu0 0.0
    %612 = vmatpush2.msra.mxu0 0.0
    %613 = vmatprep.subr.mxu0 0.0
    %614 = vmatpush2.msra.mxu0 0.0
    %615 = vmatprep.subr.mxu0 0.0
    %616 = vmatpush2.msra.mxu0 0.0
    %617 = vmatprep.subr.mxu0 0.0
    %618 = vmatpush2.msra.mxu0 0.0
    %619 = vmatprep.subr.mxu0 0.0
    %620 = vmatpush2.msra.mxu0 0.0
    %621 = vmatprep.subr.mxu0 0.0
    %622 = vmatpush2.msra.mxu0 0.0
    %623 = vmatprep.subr.mxu0 0.0
    %624 = vmatpush2.msra.mxu0 0.0
    %625 = vmatprep.subr.mxu0 0.0
    %626 = vmatpush2.msra.mxu0 0.0
    %627 = vmatprep.subr.mxu0 0.0
    %628 = vmatpush2.msra.mxu0 0.0
    %629 = vmatprep.mubr.f32.mxu0 0.0
    %630 = vmatmul.mubr.f32.gmra.mxu0 %v563
    %v631 = vpop.f32.mrf.mxu0
    %v632 = vadd.f32 0.0, %v631
    %v633 = vpop.f32.mrf.mxu0
    %634 = vdwg.mxu0
    %v635 = vadd.f32 %v561, %v632
    %v636 = vtanh.pop %v635
    %v637 = vlaneseq
    %v638 = vshrl.u32 %v637, 7
    %v639 = vsub.s32 0, %v638
    %v640 = vrot.slane %v51, %v639
    %v641 = vmul.f32 %v636, %v640
    %vm642 = vcmask 254976
    %v643 = vsel %vm642, %v641, 0.0
    %644 = vadd.xlane.f32.xlu0 %v643
    %v645 = vpop.xlane.xlu0 %644
    %s646 = sld [smem:[#allocation2]]
    %v647 = vstv %s646
    %v648 = vadd.f32 %v645, %v647
    %v650 = vlaneseq
    %v651 = vand.u32 %v650, 127
    %v652 = vlaneseq
    %v653 = vshrl.u32 %v652, 7
    %v654 = vsub.s32 %v651, %v653
    %v655 = vrot.slane %v648, %v654
    %vm657 = vcmask 8192
    %658 = vst.msk [vmem:[#allocation8] sm:$0x1] %vm657, %v655
    // Predicated region
    $region26: #{tpu_custom_call.1} parent=1 // pred_check
      _
    $region27: #{tpu_custom_call.1} parent=1 // pred_check_branch
      %660 = sbr.rel (0) target = $region29
    $region28: #{tpu_custom_call.1} parent=1 // pred_region
      %s662 = ssub.s32 16, 16
      %663 = vsyncadd [#allocation5], %s662
      %s665 = sshll.u32 [#allocation8], 4
      %s666 = int_to_ptr.vmem [resolvable:$true] %s665
      %668 = dma.vmem_to_hbm [thread:$0]  %s666, 16, %s4, [#allocation5]
    $region29: #{tpu_custom_call.1} parent=1 // pred_fallthru
      _
    // Predicated region
    $region30: #{tpu_custom_call.1} parent=1 // pred_check
      _
    $region31: #{tpu_custom_call.1} parent=1 // pred_check_branch
      %670 = sbr.rel (0) target = $region33
    $region32: #{tpu_custom_call.1} parent=1 // pred_region
      %671 = dma.done [#allocation5], 16
    $region33: #{tpu_custom_call.1} parent=1 // pred_fallthru
      _
    %672 = vsyncpa [#allocation4], 1
    %673 = vsyncpa [#allocation7], 1
    %674 = vsyncpa [#allocation5], 1

</llo_original>
